<compile_context>
chip_gen: v7x
topology: tpu7x:2x2x1
jax: 0.10.0
libtpu: 0.0.40
codegen_flags: <defaults>
</compile_context>

<pallas_src>
import jax
import jax.numpy as jnp
from jax.experimental import pallas as pl
from jax.experimental.pallas import tpu as pltpu


def info_nce_kernel(pred_ref, out_ref):
    # pred_ref: (tn, K) tile -- rows = samples, column 0 = positive logit,
    # columns 1: = negative logits.
    p = pred_ref[...].astype(jnp.float32)                        # compute in f32
    m = jnp.max(p, axis=-1, keepdims=True)                       # (tn, 1)
    # Full-row sum == numerator + negative-sum.  The sum always contains
    # exp(0) = 1 from the max element, so denom >= 1 and log(denom) is always
    # finite -- the torch "+ tiny" guard is unnecessary here.
    denom = jnp.sum(jnp.exp(p - m), axis=-1, keepdims=True)      # (tn, 1)
    pos = p[:, 0:1] - m                                          # (tn, 1) shifted positive logit
    # -log(numerator / denominator) in log-sum-exp form (no per-sample divide).
    out_ref[...] = (jnp.log(denom) - pos).astype(out_ref.dtype)  # (tn, 1) store


def info_nce_pallas(prediction_matrix, tn_max=4096):
    """prediction_matrix: (N, K); column 0 = positive logit, columns 1: = negatives.

    Returns (N, 1) per-sample InfoNCE loss terms (no reduction), in float32.
    """
    N, K = prediction_matrix.shape
    itemsize = jnp.dtype(prediction_matrix.dtype).itemsize

    # Sample tile along sublanes: big enough to amortize per-step pipeline
    # overhead, but keep >= 2 grid steps when N allows so the "parallel" axis
    # can be split across v7x's two TensorCores.
    tn = min(tn_max, N)
    if N > 8:
        tn = min(tn, -(-N // 2))          # cdiv(N, 2)
    tn = max(8, -(-tn // 8) * 8)          # round up to a sublane multiple
    grid = (pl.cdiv(N, tn),)

    # VMEM budget: the input block is lane-padded to a multiple of 128 in VMEM,
    # double buffered, plus ~3 f32 temporaries from the in-kernel astype/exp.
    lanes = max(-(-K // 128) * 128, 128)
    block_bytes = tn * lanes * itemsize
    need = 2 * block_bytes + 3 * tn * lanes * 4 + (1 << 20)
    cp_kwargs = dict(dimension_semantics=("parallel",))
    if need > 16 * 1024 * 1024:
        try:
            vmem_cap = pltpu.get_tpu_info().vmem_capacity_bytes
        except Exception:
            vmem_cap = 64 * 1024 * 1024   # conservative fallback (v7x-sized)
        cp_kwargs["vmem_limit_bytes"] = int(min(need, 0.75 * vmem_cap))
    # TODO(synk): for production-scale K (tens of thousands of negatives) add an
    # "arbitrary" K grid axis with online-softmax (running max / running sum)
    # scratch so the resident block stays well under v7x's 64 MiB VMEM.

    return pl.pallas_call(
        info_nce_kernel,
        out_shape=jax.ShapeDtypeStruct((N, 1), jnp.float32),
        grid=grid,
        in_specs=[pl.BlockSpec((tn, K), lambda j: (j, 0))],
        out_specs=pl.BlockSpec((tn, 1), lambda j: (j, 0)),
        compiler_params=pltpu.CompilerParams(**cp_kwargs),
    )(prediction_matrix)


def info_nce_ref(p):
    # Pure-JAX reference mirroring the PyTorch semantics exactly (in f32).
    p32 = p.astype(jnp.float32)
    max_val = jnp.max(p32, axis=1, keepdims=True)
    numerator = jnp.exp(p32[:, 0:1] - max_val)
    denominator = jnp.sum(jnp.exp(p32[:, 1:] - max_val), axis=1, keepdims=True) + numerator
    return -jnp.log(numerator / denominator + jnp.finfo(jnp.float32).tiny)


if __name__ == "__main__":
    key = jax.random.PRNGKey(0)
    # N samples, K = 1 positive logit + 48 negative logits (module docstring example).
    N, K = 32, 49
    prediction_matrix = jax.random.normal(key, (N, K), dtype=jnp.float32)

    out = info_nce_pallas(prediction_matrix)
    jax.block_until_ready(out)

    ref = info_nce_ref(prediction_matrix)
    assert out.shape == (N, 1)
    assert out.dtype == jnp.float32
    assert jnp.allclose(out, ref, rtol=1e-5, atol=1e-5)

    print("KERNEL_OK")
</pallas_src>

<mosaic_0001>
module attributes {stable_mosaic.version = 11 : i64} {
  func.func @info_nce_kernel(%arg0: i32, %arg1: memref<16x49xf32, #tpu.memory_space<vmem>>, %arg2: memref<16x1xf32, #tpu.memory_space<vmem>>) attributes {dimension_semantics = [#tpu.dimension_semantics<parallel>], iteration_bounds = array<i64: 2>, scalar_prefetch = 0 : i64, scratch_operands = 0 : i64, tpu.core_type = #tpu.core_type<tc>, window_params = [{transform_indices = @transform_0, window_bounds = array<i64: 16, 49>}, {transform_indices = @transform_1, window_bounds = array<i64: 16, 1>}]} {
    %c0 = arith.constant 0 : index
    %c0_0 = arith.constant 0 : index
    %0 = vector.load %arg1[%c0, %c0_0] : memref<16x49xf32, #tpu.memory_space<vmem>>, vector<16x49xf32>
    %cst = arith.constant dense<0xFF800000> : vector<16xf32>
    %1 = vector.multi_reduction <maximumf>, %0, %cst [1] : vector<16x49xf32> to vector<16xf32>
    %2 = vector.shape_cast %1 : vector<16xf32> to vector<16x1xf32>
    %3 = vector.broadcast %2 : vector<16x1xf32> to vector<16x49xf32>
    %4 = arith.subf %0, %3 : vector<16x49xf32>
    %5 = math.exp %4 : vector<16x49xf32>
    %cst_1 = arith.constant dense<0.000000e+00> : vector<16xf32>
    %6 = vector.multi_reduction <add>, %5, %cst_1 [1] : vector<16x49xf32> to vector<16xf32>
    %7 = vector.shape_cast %6 : vector<16xf32> to vector<16x1xf32>
    %8 = vector.extract_strided_slice %0 {offsets = [0, 0], sizes = [16, 1], strides = [1, 1]} : vector<16x49xf32> to vector<16x1xf32>
    %9 = arith.subf %8, %2 : vector<16x1xf32>
    %10 = math.log %7 : vector<16x1xf32>
    %11 = arith.subf %10, %9 : vector<16x1xf32>
    %c0_2 = arith.constant 0 : index
    %c0_3 = arith.constant 0 : index
    %12 = vector.load %arg2[%c0_2, %c0_3] : memref<16x1xf32, #tpu.memory_space<vmem>>, vector<16x1xf32>
    tpu.vector_store %arg2[%c0_2, %c0_3], %11 {strides = array<i32>} : memref<16x1xf32, #tpu.memory_space<vmem>>, vector<16x1xf32>,
    return
  }
  func.func @transform_0(%arg0: i32) -> (i32, i32) {
    %c0_i32 = arith.constant 0 : i32
    %c0_i32_0 = arith.constant 0 : i32
    return %arg0, %c0_i32 : i32, i32
  }
  func.func @transform_1(%arg0: i32) -> (i32, i32) {
    %c0_i32 = arith.constant 0 : i32
    %c0_i32_0 = arith.constant 0 : i32
    return %arg0, %c0_i32 : i32, i32
  }
}

</mosaic_0001>

<llo_original>
// kernel: tpu_custom_call.1
$region0: #{tpu_custom_call.1}
  #allocation0 [shape = 'u32[]', space=smem, size = 0x4, offset = 0x4, fixed_abs, tag = 'smem constant byte address 0x4 - core index']
  #allocation1 [shape = 'u32[144,128]{1,0:T(1,128)}', space=vmem, size = 0x12000, scoped, tag = 'internal scratch']
  %s0 = inlined_call_operand.hbm [shape: f32[32,49], index: 0, kind: input, shape index: {}]
  %s1 = inlined_call_operand.vmem [shape: f32[32,1], index: 1, kind: output, shape index: {}]
  %s2 = sld [smem:[#allocation0]]
  $region41: #{tpu_custom_call.1} parent=0
    _
  %s4 = ssub.s32 1, %s2
  %s5 = scalar_select 0, %s4, %s2
  $region1: #{tpu_custom_call.1} parent=0
    #allocation2 [shape = 'u8[16384]{0}', space=vmem, size = 0x4000, scoped, tag = 'input window, operand 0']
    #allocation3 [shape = 's32[2]{0}', space=sflag, size = 0x8, scoped, tag = 'scoped memory for tpu_custom_call.1']
    %6 = vsyncpa [#allocation3], 0
    %s7 = scalar_lea.sflag [#allocation3], 1
    %8 = vsyncpa %s7, 0
    loop: start=0, step=1, limit=4
    $region2: #{tpu_custom_call.1} parent=1 // loop_pre_header
      _
    $region3: #{tpu_custom_call.1} parent=1 // loop_header
      %s10 = sphi 0, %s14
      %p11 = scmp.ge.s32.totalorder %s10, 4
      %s20 = sphi 0, %s22
      %s23 = sphi 0, %s20
      %s24 = sphi 0, %s23
      %s40 = sphi 0, %s24
      %s46 = sphi 0, %s48
      %s49 = sphi 0, %s46
      %s50 = sphi 0, %s49
      %s66 = sphi 0, %s50
    $region4: #{tpu_custom_call.1} parent=1 // loop_header_branch
      %13 = sbr.rel (%p11) target = $region8
    $region5: #{tpu_custom_call.1} parent=1 // loop_body
      %s15 = ssub.s32 %s10, 1
      %s16 = ssub.s32 %s10, 2
      %s17 = sadd.s32 %s10, 1
      %s18 = ssub.s32 %s10, %s17
      %p19 = scmp.eq.s32.totalorder %s18, 0
      %s21 = sadd.s32 %s20, 1
      %s22 = scalar_select %p19, %s20, %s21
      %p25 = pneg %p19
      %p26 = scmp.eq.s32.totalorder %s10, 1
      %p27 = por %p25, %p26
      %p28 = scmp.ne.s32.totalorder %s20, %s23
      %p29 = scmp.eq.s32.totalorder %s10, 0
      %p30 = por %p28, %p29
      %p31 = scmp.ne.s32.totalorder %s20, %s23
      %p32 = scmp.eq.s32.totalorder %s15, 1
      %p33 = por %p31, %p32
      %p34 = scmp.ne.s32.totalorder %s23, %s24
      %p35 = scmp.eq.s32.totalorder %s15, 0
      %p36 = por %p34, %p35
      %p37 = scmp.ne.s32.totalorder %s23, %s24
      %p38 = scmp.eq.s32.totalorder %s16, 1
      %p39 = por %p37, %p38
      %p41 = scmp.ne.s32.totalorder %s24, %s40
      %p42 = scmp.eq.s32.totalorder %s16, 0
      %p43 = por %p41, %p42
      %s44 = ssub.s32 %s10, %s17
      %p45 = scmp.eq.s32.totalorder %s44, 0
      %s47 = sadd.s32 %s46, 1
      %s48 = scalar_select %p45, %s46, %s47
      %p51 = pneg %p45
      %p52 = scmp.eq.s32.totalorder %s10, 1
      %p53 = por %p51, %p52
      %p54 = scmp.ne.s32.totalorder %s46, %s49
      %p55 = scmp.eq.s32.totalorder %s10, 0
      %p56 = por %p54, %p55
      %p57 = scmp.ne.s32.totalorder %s46, %s49
      %p58 = scmp.eq.s32.totalorder %s15, 1
      %p59 = por %p57, %p58
      %p60 = scmp.ne.s32.totalorder %s49, %s50
      %p61 = scmp.eq.s32.totalorder %s15, 0
      %p62 = por %p60, %p61
      %p63 = scmp.ne.s32.totalorder %s49, %s50
      %p64 = scmp.eq.s32.totalorder %s16, 1
      %p65 = por %p63, %p64
      %p67 = scmp.ne.s32.totalorder %s50, %s66
      %p68 = scmp.eq.s32.totalorder %s16, 0
      %p69 = por %p67, %p68
      %p70 = scmp.le.s32.totalorder 1, %s10
      %p71 = scmp.lt.s32.totalorder %s10, 3
      %p72 = pnand %p70, %p71
      %p73 = pneg %p72
      // Predicated region
      $region9: #{tpu_custom_call.1} parent=5 // pred_check
        _
      $region10: #{tpu_custom_call.1} parent=5 // pred_check_branch
        %75 = sbr.rel (%p72) target = $region12
      $region11: #{tpu_custom_call.1} parent=5 // pred_region
        %s76 = ssub.s32 %s10, 1
      $region12: #{tpu_custom_call.1} parent=5 // pred_fallthru
        _
      %p77 = scmp.lt.s32.totalorder %s10, 2
      // Predicated region
      $region13: #{tpu_custom_call.1} parent=5 // pred_check
        %p78 = pneg %p77
      $region14: #{tpu_custom_call.1} parent=5 // pred_check_branch
        %80 = sbr.rel (%p78) target = $region16
      $region15: #{tpu_custom_call.1} parent=5 // pred_region
        // Predicated region
        $region17: #{tpu_custom_call.1} parent=15 // pred_check
          %p81 = pneg %p30
        $region18: #{tpu_custom_call.1} parent=15 // pred_check_branch
          %83 = sbr.rel (%p81) target = $region20
        $region19: #{tpu_custom_call.1} parent=15 // pred_region
          %s84 = sand.u32 %s20, 1
          %s85 = scalar_lea.sflag [#allocation3], %s84
          %s86 = sand.u32 %s20, 1
          %s87 = smul.addr %s86, 16
          %s88 = scalar_lea.vmem [#allocation2], %s87
          %s89 = smul.u32 2, %s10
          %s91 = ssub.s32 256, 256
          %92 = vsyncadd %s85, %s91
          %s93 = smul.addr %s89, 128
          %s94 = scalar_lea.hbm %s0, %s93
          %s95 = sshll.u32 %s88, 4
          %s96 = int_to_ptr.vmem [resolvable:$true] %s95
          %101 = dma.hbm_to_vmem [thread:$0]  %s94, 256, %s96, %s85, 128, 128, 8
        $region20: #{tpu_custom_call.1} parent=15 // pred_fallthru
          _
      $region16: #{tpu_custom_call.1} parent=5 // pred_fallthru
        _
      %p102 = scmp.le.s32.totalorder 1, %s10
      %p103 = scmp.lt.s32.totalorder %s10, 3
      %p104 = pnand %p102, %p103
      %p105 = pneg %p104
      // Predicated region
      $region21: #{tpu_custom_call.1} parent=5 // pred_check
        _
      $region22: #{tpu_custom_call.1} parent=5 // pred_check_branch
        %107 = sbr.rel (%p104) target = $region24
      $region23: #{tpu_custom_call.1} parent=5 // pred_region
        %s108 = ssub.s32 %s10, 1
        %s109 = sand.u32 %s23, 1
        %s110 = scalar_lea.sflag [#allocation3], %s109
        %s111 = sand.u32 %s23, 1
        %s112 = smul.addr %s111, 16
        %s113 = scalar_lea.vmem [#allocation2], %s112
        // Predicated region
        $region25: #{tpu_custom_call.1} parent=23 // pred_check
          %p114 = pneg %p36
        $region26: #{tpu_custom_call.1} parent=23 // pred_check_branch
          %116 = sbr.rel (%p114) target = $region28
        $region27: #{tpu_custom_call.1} parent=23 // pred_region
          %117 = dma.done %s110, 256
        $region28: #{tpu_custom_call.1} parent=23 // pred_fallthru
          _
        %s118 = sand.u32 %s23, 1
        %s119 = scalar_lea.sflag [#allocation3], %s118
        %s120 = sand.u32 %s23, 1
        %s121 = smul.addr %s120, 16
        %s122 = scalar_lea.vmem [#allocation2], %s121
        %p123 = pneg %p36
        %p124 = pneg %p33
        %p125 = pneg %p62
        %p126 = pneg %p59
        %s127 = smul.u32 2, %s15
        %p128 = scmp.lt.s32.totalorder %s127, 3
        %s129 = scalar_select %p128, %s127, 3
        %s130 = smul.addr %s129, 8
        %s131 = scalar_lea.vmem %s1, %s130
        %s132 = smul.u32 2, %s15
        %s133 = smul.u32 2, %s15
        %p134 = scmp.lt.s32.totalorder %s133, 3
        %s135 = scalar_select %p134, %s133, 3
        %s136 = smul.addr %s135, 8
        %s137 = scalar_lea.vmem %s1, %s136
        %s138 = smul.u32 2, %s15
        %v139 = vld [vmem:[%s113] sm:$0xff]
        %v140 = vld [vmem:[%s113 + $0x8] sm:$0xff]
        %vm141 = vcmask 400384
        %v142 = vsel %vm141, %v139, -inf
        %143 = vmax.xlane.f32.xlu0 %v142
        %v144 = vpop.xlane.xlu0 %143
        %v145 = vsel %vm141, %v140, -inf
        %146 = vmax.xlane.f32.xlu0 %v145
        %v147 = vpop.xlane.xlu0 %146
        %v148 = vsub.f32 %v139, %v144
        %v149 = vsub.f32 %v140, %v147
        %v150 = vmul.f32 %v148, 1.442695
        %v151 = vpow.pop %v150
        %v152 = vmul.f32 %v149, 1.442695
        %v153 = vpow.pop %v152
        %v154 = vsel %vm141, %v151, 0.0
        %155 = vadd.xlane.f32.xlu0 %v154
        %v156 = vpop.xlane.xlu0 %155
        %v157 = vsel %vm141, %v153, 0.0
        %158 = vadd.xlane.f32.xlu0 %v157
        %v159 = vpop.xlane.xlu0 %158
        %v160 = vlog2.pop %v156
        %v161 = vmul.f32 %v160, 0.6931472
        %v162 = vlog2.pop %v159
        %v163 = vmul.f32 %v162, 0.6931472
        %v164 = vsub.f32 %v161, %v148
        %v165 = vsub.f32 %v163, %v149
        %vm166 = vcmask 7168
        %167 = vst.msk [vmem:[%s137] sm:$0xff] %vm166, %v164
        %168 = vst.msk [vmem:[%s137 + $0x8] sm:$0xff] %vm166, %v165
        %s169 = smul.u32 2, %s15
        %p170 = scmp.lt.s32.totalorder %s169, 3
        %s171 = scalar_select %p170, %s169, 3
        %s172 = smul.addr %s171, 8
        %s173 = scalar_lea.vmem %s1, %s172
        // Predicated region
        $region29: #{tpu_custom_call.1} parent=23 // pred_check
          %p174 = pneg %p59
        $region30: #{tpu_custom_call.1} parent=23 // pred_check_branch
          %176 = sbr.rel (%p174) target = $region32
        $region31: #{tpu_custom_call.1} parent=23 // pred_region
          %s177 = smul.u32 2, %s15
        $region32: #{tpu_custom_call.1} parent=23 // pred_fallthru
          _
      $region24: #{tpu_custom_call.1} parent=5 // pred_fallthru
        _
      %p178 = scmp.le.s32.totalorder 2, %s10
      // Predicated region
      $region33: #{tpu_custom_call.1} parent=5 // pred_check
        %p179 = pneg %p178
      $region34: #{tpu_custom_call.1} parent=5 // pred_check_branch
        %181 = sbr.rel (%p179) target = $region36
      $region35: #{tpu_custom_call.1} parent=5 // pred_region
        %s182 = ssub.s32 %s10, 2
        // Predicated region
        $region37: #{tpu_custom_call.1} parent=35 // pred_check
          %p183 = pneg %p65
        $region38: #{tpu_custom_call.1} parent=35 // pred_check_branch
          %185 = sbr.rel (%p183) target = $region40
        $region39: #{tpu_custom_call.1} parent=35 // pred_region
          %s186 = smul.u32 2, %s16
          %p187 = scmp.lt.s32.totalorder %s186, 3
          %s188 = scalar_select %p187, %s186, 3
          %s189 = smul.addr %s188, 8
          %s190 = scalar_lea.vmem %s1, %s189
        $region40: #{tpu_custom_call.1} parent=35 // pred_fallthru
          _
      $region36: #{tpu_custom_call.1} parent=5 // pred_fallthru
        _
    $region6: #{tpu_custom_call.1} parent=1 // loop_footer
      %s14 = sadd.s32 1, %s10
    $region7: #{tpu_custom_call.1} parent=1 // loop_footer_branch
      %9 = sbr.rel target = $region3
    $region8: #{tpu_custom_call.1} parent=1 // loop_exit
      _
    %191 = vsyncpa [#allocation3], 1
    %s192 = scalar_lea.sflag [#allocation3], 1
    %193 = vsyncpa %s192, 1

</llo_original>
